<compile_context>
chip_gen: v6e
topology: v6e:2x2x1
jax: 0.10.0
libtpu: 0.0.40
codegen_flags: <defaults>
</compile_context>

<pallas_src>
import functools

import jax
import jax.numpy as jnp
from jax.experimental import pallas as pl
from jax.experimental.pallas import tpu as pltpu

LN_EPS = 1e-5
_LANE = 128
_SUBLANE = 8


def _round_up(x, m):
    return (x + m - 1) // m * m


def _layernorm_tanh(h, gamma, beta, d_actual):
    """LayerNorm over the first `d_actual` lanes of h (remaining lanes are
    guaranteed zero-padded), biased variance, eps=1e-5, followed by tanh.

    All math in float32.  Padded lanes of the result are exactly 0 because
    centered is masked to 0 there and gamma/beta are zero-padded, which keeps
    the zero-padding invariant alive through the residual adds.
    """
    d_padded = h.shape[-1]
    inv_d = 1.0 / float(d_actual)
    mean = jnp.sum(h, axis=-1, keepdims=True) * inv_d   # padded lanes of h are 0
    centered = h - mean
    if d_actual != d_padded:
        lane = jax.lax.broadcasted_iota(jnp.int32, h.shape, dimension=1)
        centered = jnp.where(lane < d_actual, centered, 0.0)
    var = jnp.sum(centered * centered, axis=-1, keepdims=True) * inv_d
    inv = jax.lax.rsqrt(var + LN_EPS)
    return jnp.tanh(centered * inv * gamma + beta)


def _generator_kernel(d_in, d_out,
                      x_ref,
                      w0_ref, g0_ref, b0_ref,
                      w1_ref, g1_ref, b1_ref,
                      w2_ref, g2_ref, b2_ref,
                      o_ref):
    x = x_ref[...].astype(jnp.float32)

    # block_0 + residual (matmul operands in the weights' dtype, f32 accum).
    h = jnp.dot(x.astype(w0_ref.dtype), w0_ref[...],
                preferred_element_type=jnp.float32)
    x = _layernorm_tanh(h, g0_ref[...], b0_ref[...], d_in) + x

    # block_1 + residual
    h = jnp.dot(x.astype(w1_ref.dtype), w1_ref[...],
                preferred_element_type=jnp.float32)
    x = _layernorm_tanh(h, g1_ref[...], b1_ref[...], d_in) + x

    # block_2 (no residual; may change feature dim)
    h = jnp.dot(x.astype(w2_ref.dtype), w2_ref[...],
                preferred_element_type=jnp.float32)
    o_ref[...] = _layernorm_tanh(h, g2_ref[...], b2_ref[...], d_out
                                 ).astype(o_ref.dtype)


@functools.partial(jax.jit, static_argnames=("block_rows", "use_bf16"))
def generator_forward(x, params, block_rows=256, use_bf16=False):
    """x: [B, D_in] float32.  params: dict of weights (see init_params)."""
    B, d_in = x.shape
    d_out = params["w2"].shape[1]

    # Lane-dense feature padding and sublane-aligned batch tiling.
    d_in_p = _round_up(d_in, _LANE)
    d_out_p = _round_up(d_out, _LANE)
    block_rows = _round_up(min(block_rows, _round_up(B, _SUBLANE)), _SUBLANE)
    block_rows = max(block_rows, _SUBLANE)
    B_p = _round_up(B, block_rows)
    grid = (B_p // block_rows,)

    w_dtype = jnp.bfloat16 if use_bf16 else jnp.float32
    w_bytes = jnp.dtype(w_dtype).itemsize

    def pad2(a, rows, cols, dtype=jnp.float32):
        a = a.astype(dtype)
        return jnp.pad(a, ((0, rows - a.shape[0]), (0, cols - a.shape[1])))

    x_p = pad2(x, B_p, d_in_p)
    w0 = pad2(params["w0"], d_in_p, d_in_p, w_dtype)
    w1 = pad2(params["w1"], d_in_p, d_in_p, w_dtype)
    w2 = pad2(params["w2"], d_in_p, d_out_p, w_dtype)
    g0 = pad2(params["g0"], 1, d_in_p)
    b0 = pad2(params["b0"], 1, d_in_p)
    g1 = pad2(params["g1"], 1, d_in_p)
    b1 = pad2(params["b1"], 1, d_in_p)
    g2 = pad2(params["g2"], 1, d_out_p)
    b2 = pad2(params["b2"], 1, d_out_p)

    def row_spec(d):
        return pl.BlockSpec((block_rows, d), lambda i: (i, 0))

    def full_spec(shape):
        return pl.BlockSpec(shape, lambda i: tuple(0 for _ in shape))

    in_specs = [
        row_spec(d_in_p),                      # x tile
        full_spec((d_in_p, d_in_p)),           # w0
        full_spec((1, d_in_p)),                # gamma0
        full_spec((1, d_in_p)),                # beta0
        full_spec((d_in_p, d_in_p)),           # w1
        full_spec((1, d_in_p)),                # gamma1
        full_spec((1, d_in_p)),                # beta1
        full_spec((d_in_p, d_out_p)),          # w2
        full_spec((1, d_out_p)),               # gamma2
        full_spec((1, d_out_p)),               # beta2
    ]

    # Advisory cost estimate for XLA scheduling around the custom call.
    weight_elems = 2 * d_in_p * d_in_p + d_in_p * d_out_p
    cost = pl.CostEstimate(
        flops=2 * B_p * weight_elems,
        transcendentals=B_p * (2 * d_in_p + d_out_p + 3),
        bytes_accessed=(B_p * (d_in_p + d_out_p) * 4
                        + weight_elems * w_bytes
                        + (4 * d_in_p + 2 * d_out_p) * 4),
    )

    # Conservative VMEM budget: double-buffered I/O tiles + (default
    # double-buffered) grid-invariant weights/LN params + f32 intermediates.
    vmem_need = (2 * block_rows * (d_in_p + d_out_p) * 4
                 + 2 * weight_elems * w_bytes
                 + 2 * (4 * d_in_p + 2 * d_out_p) * 4
                 + 4 * block_rows * d_in_p * 4)
    vmem_limit = int(min(64 * 1024 * 1024, max(2 * vmem_need, 32 * 1024 * 1024)))

    kernel = functools.partial(_generator_kernel, d_in, d_out)

    out_p = pl.pallas_call(
        kernel,
        out_shape=jax.ShapeDtypeStruct((B_p, d_out_p), jnp.float32),
        grid_spec=pltpu.PrefetchScalarGridSpec(
            num_scalar_prefetch=0,
            grid=grid,
            in_specs=in_specs,
            out_specs=row_spec(d_out_p),
        ),
        compiler_params=pltpu.CompilerParams(
            dimension_semantics=("parallel",),
            vmem_limit_bytes=vmem_limit),
        cost_estimate=cost,
    )(x_p, w0, g0, b0, w1, g1, b1, w2, g2, b2)

    return out_p[:B, :d_out]


def init_params(key, input_dim, output_dim):
    """Deterministic synthetic parameter init (shapes match the nn.Module)."""
    k0, k1, k2 = jax.random.split(key, 3)

    def lin(k, fan_in, fan_out):
        # kaiming-uniform-ish bound like nn.Linear default.
        bound = 1.0 / jnp.sqrt(fan_in)
        # stored as [in, out] so the kernel does x @ W
        return jax.random.uniform(k, (fan_in, fan_out), jnp.float32,
                                  -bound, bound)

    return {
        "w0": lin(k0, input_dim, input_dim),
        "g0": jnp.ones((1, input_dim), jnp.float32),
        "b0": jnp.zeros((1, input_dim), jnp.float32),
        "w1": lin(k1, input_dim, input_dim),
        "g1": jnp.ones((1, input_dim), jnp.float32),
        "b1": jnp.zeros((1, input_dim), jnp.float32),
        "w2": lin(k2, input_dim, output_dim),
        "g2": jnp.ones((1, output_dim), jnp.float32),
        "b2": jnp.zeros((1, output_dim), jnp.float32),
    }


def generator_reference(x, params):
    """Pure-JAX reference mirroring the PyTorch forward (for verification)."""
    def block(h, w, g, b):
        y = h @ w
        m = jnp.mean(y, axis=-1, keepdims=True)
        v = jnp.mean((y - m) ** 2, axis=-1, keepdims=True)
        return jnp.tanh((y - m) / jnp.sqrt(v + LN_EPS) * g + b)

    x = block(x, params["w0"], params["g0"], params["b0"]) + x
    x = block(x, params["w1"], params["g1"], params["b1"]) + x
    x = block(x, params["w2"], params["g2"], params["b2"])
    return x


if __name__ == "__main__":
    key = jax.random.PRNGKey(0)
    k_x, k_p = jax.random.split(key)

    batch, input_dim, output_dim = 16, 32, 16
    x = jax.random.normal(k_x, (batch, input_dim), jnp.float32)
    params = init_params(k_p, input_dim, output_dim)

    ref = generator_reference(x, params)

    # f32 matmul operands: matches the PyTorch module numerics.
    out = generator_forward(x, params, block_rows=256, use_bf16=False)
    out = jax.block_until_ready(out)
    assert out.shape == (batch, output_dim)
    assert jnp.allclose(out, ref, atol=1e-5, rtol=1e-5), (
        float(jnp.max(jnp.abs(out - ref))))

    # bf16 matmul operands (recommended on v6e/v7x): f32 accumulation and f32
    # LayerNorm/tanh; looser tolerance reflects bf16 operand rounding only.
    out_bf16 = generator_forward(x, params, block_rows=256, use_bf16=True)
    out_bf16 = jax.block_until_ready(out_bf16)
    assert out_bf16.shape == (batch, output_dim)
    assert jnp.allclose(out_bf16, ref, atol=5e-2, rtol=5e-2), (
        float(jnp.max(jnp.abs(out_bf16 - ref))))

    print("KERNEL_OK")
</pallas_src>

<mosaic_0001>
module attributes {stable_mosaic.version = 11 : i64} {
  func.func @_generator_kernel(%arg0: i32, %arg1: memref<16x128xf32, #tpu.memory_space<vmem>>, %arg2: memref<128x128xf32, #tpu.memory_space<vmem>>, %arg3: memref<1x128xf32, #tpu.memory_space<vmem>>, %arg4: memref<1x128xf32, #tpu.memory_space<vmem>>, %arg5: memref<128x128xf32, #tpu.memory_space<vmem>>, %arg6: memref<1x128xf32, #tpu.memory_space<vmem>>, %arg7: memref<1x128xf32, #tpu.memory_space<vmem>>, %arg8: memref<128x128xf32, #tpu.memory_space<vmem>>, %arg9: memref<1x128xf32, #tpu.memory_space<vmem>>, %arg10: memref<1x128xf32, #tpu.memory_space<vmem>>, %arg11: memref<16x128xf32, #tpu.memory_space<vmem>>) attributes {dimension_semantics = [#tpu.dimension_semantics<parallel>], iteration_bounds = array<i64: 1>, scalar_prefetch = 0 : i64, scratch_operands = 0 : i64, tpu.core_type = #tpu.core_type<tc>, window_params = [{transform_indices = @transform_0, window_bounds = array<i64: 16, 128>}, {pipeline_mode = #tpu.pipeline_mode<synchronous>, transform_indices = @transform_1, window_bounds = array<i64: 128, 128>}, {pipeline_mode = #tpu.pipeline_mode<synchronous>, transform_indices = @transform_2, window_bounds = array<i64: 1, 128>}, {pipeline_mode = #tpu.pipeline_mode<synchronous>, transform_indices = @transform_3, window_bounds = array<i64: 1, 128>}, {pipeline_mode = #tpu.pipeline_mode<synchronous>, transform_indices = @transform_4, window_bounds = array<i64: 128, 128>}, {pipeline_mode = #tpu.pipeline_mode<synchronous>, transform_indices = @transform_5, window_bounds = array<i64: 1, 128>}, {pipeline_mode = #tpu.pipeline_mode<synchronous>, transform_indices = @transform_6, window_bounds = array<i64: 1, 128>}, {pipeline_mode = #tpu.pipeline_mode<synchronous>, transform_indices = @transform_7, window_bounds = array<i64: 128, 128>}, {pipeline_mode = #tpu.pipeline_mode<synchronous>, transform_indices = @transform_8, window_bounds = array<i64: 1, 128>}, {pipeline_mode = #tpu.pipeline_mode<synchronous>, transform_indices = @transform_9, window_bounds = array<i64: 1, 128>}, {transform_indices = @transform_10, window_bounds = array<i64: 16, 128>}]} {
    %c0 = arith.constant 0 : index
    %c0_0 = arith.constant 0 : index
    %0 = vector.load %arg1[%c0, %c0_0] : memref<16x128xf32, #tpu.memory_space<vmem>>, vector<16x128xf32>
    %c0_1 = arith.constant 0 : index
    %c0_2 = arith.constant 0 : index
    %1 = vector.load %arg2[%c0_1, %c0_2] : memref<128x128xf32, #tpu.memory_space<vmem>>, vector<128x128xf32>
    %cst = arith.constant dense<0.000000e+00> : vector<16x128xf32>
    %2 = tpu.matmul %0, %1, %cst {dimension_numbers = #tpu.dot_dimension_numbers<[1], [0], [0], [1], [0, 0, 1, 1], [], []>} : vector<16x128xf32>, vector<128x128xf32>, vector<16x128xf32> -> vector<16x128xf32>
    %c0_3 = arith.constant 0 : index
    %c0_4 = arith.constant 0 : index
    %3 = vector.load %arg3[%c0_3, %c0_4] : memref<1x128xf32, #tpu.memory_space<vmem>>, vector<1x128xf32>
    %c0_5 = arith.constant 0 : index
    %c0_6 = arith.constant 0 : index
    %4 = vector.load %arg4[%c0_5, %c0_6] : memref<1x128xf32, #tpu.memory_space<vmem>>, vector<1x128xf32>
    %cst_7 = arith.constant dense<0.000000e+00> : vector<16xf32>
    %5 = vector.multi_reduction <add>, %2, %cst_7 [1] : vector<16x128xf32> to vector<16xf32>
    %6 = vector.shape_cast %5 : vector<16xf32> to vector<16x1xf32>
    %cst_8 = arith.constant 3.125000e-02 : f32
    %7 = vector.broadcast %cst_8 : f32 to vector<16x1xf32>
    %8 = arith.mulf %6, %7 : vector<16x1xf32>
    %9 = vector.broadcast %8 : vector<16x1xf32> to vector<16x128xf32>
    %10 = arith.subf %2, %9 : vector<16x128xf32>
    %11 = tpu.iota {dimensions = array<i32: 1>} : vector<16x128xi32>
    %c32_i32 = arith.constant 32 : i32
    %12 = vector.broadcast %c32_i32 : i32 to vector<16x128xi32>
    %13 = arith.cmpi slt, %11, %12 : vector<16x128xi32>
    %cst_9 = arith.constant 0.000000e+00 : f32
    %14 = vector.broadcast %cst_9 : f32 to vector<16x128xf32>
    %15 = arith.select %13, %10, %14 : vector<16x128xi1>, vector<16x128xf32>
    %16 = arith.mulf %15, %15 : vector<16x128xf32>
    %cst_10 = arith.constant dense<0.000000e+00> : vector<16xf32>
    %17 = vector.multi_reduction <add>, %16, %cst_10 [1] : vector<16x128xf32> to vector<16xf32>
    %18 = vector.shape_cast %17 : vector<16xf32> to vector<16x1xf32>
    %cst_11 = arith.constant 3.125000e-02 : f32
    %19 = vector.broadcast %cst_11 : f32 to vector<16x1xf32>
    %20 = arith.mulf %18, %19 : vector<16x1xf32>
    %cst_12 = arith.constant 9.99999974E-6 : f32
    %21 = vector.broadcast %cst_12 : f32 to vector<16x1xf32>
    %22 = arith.addf %20, %21 : vector<16x1xf32>
    %23 = math.rsqrt %22 : vector<16x1xf32>
    %24 = vector.broadcast %23 : vector<16x1xf32> to vector<16x128xf32>
    %25 = arith.mulf %15, %24 : vector<16x128xf32>
    %26 = vector.broadcast %3 : vector<1x128xf32> to vector<16x128xf32>
    %27 = arith.mulf %25, %26 : vector<16x128xf32>
    %28 = vector.broadcast %4 : vector<1x128xf32> to vector<16x128xf32>
    %29 = arith.addf %27, %28 : vector<16x128xf32>
    %30 = math.tanh %29 : vector<16x128xf32>
    %31 = arith.addf %30, %0 : vector<16x128xf32>
    %c0_13 = arith.constant 0 : index
    %c0_14 = arith.constant 0 : index
    %32 = vector.load %arg5[%c0_13, %c0_14] : memref<128x128xf32, #tpu.memory_space<vmem>>, vector<128x128xf32>
    %cst_15 = arith.constant dense<0.000000e+00> : vector<16x128xf32>
    %33 = tpu.matmul %31, %32, %cst_15 {dimension_numbers = #tpu.dot_dimension_numbers<[1], [0], [0], [1], [0, 0, 1, 1], [], []>} : vector<16x128xf32>, vector<128x128xf32>, vector<16x128xf32> -> vector<16x128xf32>
    %c0_16 = arith.constant 0 : index
    %c0_17 = arith.constant 0 : index
    %34 = vector.load %arg6[%c0_16, %c0_17] : memref<1x128xf32, #tpu.memory_space<vmem>>, vector<1x128xf32>
    %c0_18 = arith.constant 0 : index
    %c0_19 = arith.constant 0 : index
    %35 = vector.load %arg7[%c0_18, %c0_19] : memref<1x128xf32, #tpu.memory_space<vmem>>, vector<1x128xf32>
    %cst_20 = arith.constant dense<0.000000e+00> : vector<16xf32>
    %36 = vector.multi_reduction <add>, %33, %cst_20 [1] : vector<16x128xf32> to vector<16xf32>
    %37 = vector.shape_cast %36 : vector<16xf32> to vector<16x1xf32>
    %cst_21 = arith.constant 3.125000e-02 : f32
    %38 = vector.broadcast %cst_21 : f32 to vector<16x1xf32>
    %39 = arith.mulf %37, %38 : vector<16x1xf32>
    %40 = vector.broadcast %39 : vector<16x1xf32> to vector<16x128xf32>
    %41 = arith.subf %33, %40 : vector<16x128xf32>
    %42 = tpu.iota {dimensions = array<i32: 1>} : vector<16x128xi32>
    %c32_i32_22 = arith.constant 32 : i32
    %43 = vector.broadcast %c32_i32_22 : i32 to vector<16x128xi32>
    %44 = arith.cmpi slt, %42, %43 : vector<16x128xi32>
    %cst_23 = arith.constant 0.000000e+00 : f32
    %45 = vector.broadcast %cst_23 : f32 to vector<16x128xf32>
    %46 = arith.select %44, %41, %45 : vector<16x128xi1>, vector<16x128xf32>
    %47 = arith.mulf %46, %46 : vector<16x128xf32>
    %cst_24 = arith.constant dense<0.000000e+00> : vector<16xf32>
    %48 = vector.multi_reduction <add>, %47, %cst_24 [1] : vector<16x128xf32> to vector<16xf32>
    %49 = vector.shape_cast %48 : vector<16xf32> to vector<16x1xf32>
    %cst_25 = arith.constant 3.125000e-02 : f32
    %50 = vector.broadcast %cst_25 : f32 to vector<16x1xf32>
    %51 = arith.mulf %49, %50 : vector<16x1xf32>
    %cst_26 = arith.constant 9.99999974E-6 : f32
    %52 = vector.broadcast %cst_26 : f32 to vector<16x1xf32>
    %53 = arith.addf %51, %52 : vector<16x1xf32>
    %54 = math.rsqrt %53 : vector<16x1xf32>
    %55 = vector.broadcast %54 : vector<16x1xf32> to vector<16x128xf32>
    %56 = arith.mulf %46, %55 : vector<16x128xf32>
    %57 = vector.broadcast %34 : vector<1x128xf32> to vector<16x128xf32>
    %58 = arith.mulf %56, %57 : vector<16x128xf32>
    %59 = vector.broadcast %35 : vector<1x128xf32> to vector<16x128xf32>
    %60 = arith.addf %58, %59 : vector<16x128xf32>
    %61 = math.tanh %60 : vector<16x128xf32>
    %62 = arith.addf %61, %31 : vector<16x128xf32>
    %c0_27 = arith.constant 0 : index
    %c0_28 = arith.constant 0 : index
    %63 = vector.load %arg8[%c0_27, %c0_28] : memref<128x128xf32, #tpu.memory_space<vmem>>, vector<128x128xf32>
    %cst_29 = arith.constant dense<0.000000e+00> : vector<16x128xf32>
    %64 = tpu.matmul %62, %63, %cst_29 {dimension_numbers = #tpu.dot_dimension_numbers<[1], [0], [0], [1], [0, 0, 1, 1], [], []>} : vector<16x128xf32>, vector<128x128xf32>, vector<16x128xf32> -> vector<16x128xf32>
    %c0_30 = arith.constant 0 : index
    %c0_31 = arith.constant 0 : index
    %65 = vector.load %arg9[%c0_30, %c0_31] : memref<1x128xf32, #tpu.memory_space<vmem>>, vector<1x128xf32>
    %c0_32 = arith.constant 0 : index
    %c0_33 = arith.constant 0 : index
    %66 = vector.load %arg10[%c0_32, %c0_33] : memref<1x128xf32, #tpu.memory_space<vmem>>, vector<1x128xf32>
    %cst_34 = arith.constant dense<0.000000e+00> : vector<16xf32>
    %67 = vector.multi_reduction <add>, %64, %cst_34 [1] : vector<16x128xf32> to vector<16xf32>
    %68 = vector.shape_cast %67 : vector<16xf32> to vector<16x1xf32>
    %cst_35 = arith.constant 6.250000e-02 : f32
    %69 = vector.broadcast %cst_35 : f32 to vector<16x1xf32>
    %70 = arith.mulf %68, %69 : vector<16x1xf32>
    %71 = vector.broadcast %70 : vector<16x1xf32> to vector<16x128xf32>
    %72 = arith.subf %64, %71 : vector<16x128xf32>
    %73 = tpu.iota {dimensions = array<i32: 1>} : vector<16x128xi32>
    %c16_i32 = arith.constant 16 : i32
    %74 = vector.broadcast %c16_i32 : i32 to vector<16x128xi32>
    %75 = arith.cmpi slt, %73, %74 : vector<16x128xi32>
    %cst_36 = arith.constant 0.000000e+00 : f32
    %76 = vector.broadcast %cst_36 : f32 to vector<16x128xf32>
    %77 = arith.select %75, %72, %76 : vector<16x128xi1>, vector<16x128xf32>
    %78 = arith.mulf %77, %77 : vector<16x128xf32>
    %cst_37 = arith.constant dense<0.000000e+00> : vector<16xf32>
    %79 = vector.multi_reduction <add>, %78, %cst_37 [1] : vector<16x128xf32> to vector<16xf32>
    %80 = vector.shape_cast %79 : vector<16xf32> to vector<16x1xf32>
    %cst_38 = arith.constant 6.250000e-02 : f32
    %81 = vector.broadcast %cst_38 : f32 to vector<16x1xf32>
    %82 = arith.mulf %80, %81 : vector<16x1xf32>
    %cst_39 = arith.constant 9.99999974E-6 : f32
    %83 = vector.broadcast %cst_39 : f32 to vector<16x1xf32>
    %84 = arith.addf %82, %83 : vector<16x1xf32>
    %85 = math.rsqrt %84 : vector<16x1xf32>
    %86 = vector.broadcast %85 : vector<16x1xf32> to vector<16x128xf32>
    %87 = arith.mulf %77, %86 : vector<16x128xf32>
    %88 = vector.broadcast %65 : vector<1x128xf32> to vector<16x128xf32>
    %89 = arith.mulf %87, %88 : vector<16x128xf32>
    %90 = vector.broadcast %66 : vector<1x128xf32> to vector<16x128xf32>
    %91 = arith.addf %89, %90 : vector<16x128xf32>
    %92 = math.tanh %91 : vector<16x128xf32>
    %c0_40 = arith.constant 0 : index
    %c0_41 = arith.constant 0 : index
    %93 = vector.load %arg11[%c0_40, %c0_41] : memref<16x128xf32, #tpu.memory_space<vmem>>, vector<16x128xf32>
    tpu.vector_store %arg11[%c0_40, %c0_41], %92 {strides = array<i32>} : memref<16x128xf32, #tpu.memory_space<vmem>>, vector<16x128xf32>,
    return
  }
  func.func @transform_0(%arg0: i32) -> (i32, i32) {
    %c0_i32 = arith.constant 0 : i32
    %c0_i32_0 = arith.constant 0 : i32
    return %arg0, %c0_i32 : i32, i32
  }
  func.func @transform_1(%arg0: i32) -> (i32, i32) {
    %c0_i32 = arith.constant 0 : i32
    %c0_i32_0 = arith.constant 0 : i32
    %c0_i32_1 = arith.constant 0 : i32
    return %c0_i32, %c0_i32_0 : i32, i32
  }
  func.func @transform_2(%arg0: i32) -> (i32, i32) {
    %c0_i32 = arith.constant 0 : i32
    %c0_i32_0 = arith.constant 0 : i32
    %c0_i32_1 = arith.constant 0 : i32
    return %c0_i32, %c0_i32_0 : i32, i32
  }
  func.func @transform_3(%arg0: i32) -> (i32, i32) {
    %c0_i32 = arith.constant 0 : i32
    %c0_i32_0 = arith.constant 0 : i32
    %c0_i32_1 = arith.constant 0 : i32
    return %c0_i32, %c0_i32_0 : i32, i32
  }
  func.func @transform_4(%arg0: i32) -> (i32, i32) {
    %c0_i32 = arith.constant 0 : i32
    %c0_i32_0 = arith.constant 0 : i32
    %c0_i32_1 = arith.constant 0 : i32
    return %c0_i32, %c0_i32_0 : i32, i32
  }
  func.func @transform_5(%arg0: i32) -> (i32, i32) {
    %c0_i32 = arith.constant 0 : i32
    %c0_i32_0 = arith.constant 0 : i32
    %c0_i32_1 = arith.constant 0 : i32
    return %c0_i32, %c0_i32_0 : i32, i32
  }
  func.func @transform_6(%arg0: i32) -> (i32, i32) {
    %c0_i32 = arith.constant 0 : i32
    %c0_i32_0 = arith.constant 0 : i32
    %c0_i32_1 = arith.constant 0 : i32
    return %c0_i32, %c0_i32_0 : i32, i32
  }
  func.func @transform_7(%arg0: i32) -> (i32, i32) {
    %c0_i32 = arith.constant 0 : i32
    %c0_i32_0 = arith.constant 0 : i32
    %c0_i32_1 = arith.constant 0 : i32
    return %c0_i32, %c0_i32_0 : i32, i32
  }
  func.func @transform_8(%arg0: i32) -> (i32, i32) {
    %c0_i32 = arith.constant 0 : i32
    %c0_i32_0 = arith.constant 0 : i32
    %c0_i32_1 = arith.constant 0 : i32
    return %c0_i32, %c0_i32_0 : i32, i32
  }
  func.func @transform_9(%arg0: i32) -> (i32, i32) {
    %c0_i32 = arith.constant 0 : i32
    %c0_i32_0 = arith.constant 0 : i32
    %c0_i32_1 = arith.constant 0 : i32
    return %c0_i32, %c0_i32_0 : i32, i32
  }
  func.func @transform_10(%arg0: i32) -> (i32, i32) {
    %c0_i32 = arith.constant 0 : i32
    %c0_i32_0 = arith.constant 0 : i32
    return %arg0, %c0_i32 : i32, i32
  }
}

</mosaic_0001>

<llo_original>
// kernel: generator_forward.1
$region0: #{generator_forward.1}
  #allocation0 [shape = 'u32[]', space=smem, size = 0x4, offset = 0x4, fixed_abs, tag = 'smem constant byte address 0x4 - core index']
  #allocation1 [shape = 'u32[144,128]{1,0:T(1,128)}', space=vmem, size = 0x12000, scoped, tag = 'internal scratch']
  %s0 = inlined_call_operand.vmem [shape: f32[16,128], index: 0, kind: input, shape index: {}]
  %s1 = inlined_call_operand.vmem [shape: f32[128,128], index: 1, kind: input, shape index: {}]
  %s2 = inlined_call_operand.vmem [shape: f32[1,128], index: 2, kind: input, shape index: {}]
  %s3 = inlined_call_operand.vmem [shape: f32[1,128], index: 3, kind: input, shape index: {}]
  %s4 = inlined_call_operand.vmem [shape: f32[128,128], index: 4, kind: input, shape index: {}]
  %s5 = inlined_call_operand.vmem [shape: f32[1,128], index: 5, kind: input, shape index: {}]
  %s6 = inlined_call_operand.vmem [shape: f32[1,128], index: 6, kind: input, shape index: {}]
  %s7 = inlined_call_operand.vmem [shape: f32[128,128], index: 7, kind: input, shape index: {}]
  %s8 = inlined_call_operand.vmem [shape: f32[1,128], index: 8, kind: input, shape index: {}]
  %s9 = inlined_call_operand.vmem [shape: f32[1,128], index: 9, kind: input, shape index: {}]
  %s10 = inlined_call_operand.hbm [shape: f32[16,128], index: 10, kind: output, shape index: {}]
  %s11 = sld [smem:[#allocation0]]
  $region50: #{generator_forward.1} parent=0
    _
  %s13 = ssub.s32 1, %s11
  %s14 = scalar_select 0, %s13, %s11
  $region1: #{generator_forward.1} parent=0
    #allocation2 [shape = 'u8[8192]{0}', space=vmem, size = 0x2000, scoped, tag = 'output window, operand 0, single buffered']
    #allocation3 [shape = 's32[1]{0}', space=sflag, size = 0x4, scoped, tag = 'scoped memory for generator_forward.1']
    %15 = vsyncpa [#allocation3], 0
    // Predicated region
    $region2: #{generator_forward.1} parent=1 // pred_check
      _
    $region3: #{generator_forward.1} parent=1 // pred_check_branch
      %17 = sbr.rel (0) target = $region5
    $region4: #{generator_forward.1} parent=1 // pred_region
      _
    $region5: #{generator_forward.1} parent=1 // pred_fallthru
      _
    // Predicated region
    $region6: #{generator_forward.1} parent=1 // pred_check
      _
    $region7: #{generator_forward.1} parent=1 // pred_check_branch
      %19 = sbr.rel (0) target = $region9
    $region8: #{generator_forward.1} parent=1 // pred_region
      _
    $region9: #{generator_forward.1} parent=1 // pred_fallthru
      _
    // Predicated region
    $region10: #{generator_forward.1} parent=1 // pred_check
      _
    $region11: #{generator_forward.1} parent=1 // pred_check_branch
      %21 = sbr.rel (0) target = $region13
    $region12: #{generator_forward.1} parent=1 // pred_region
      _
    $region13: #{generator_forward.1} parent=1 // pred_fallthru
      _
    // Predicated region
    $region14: #{generator_forward.1} parent=1 // pred_check
      _
    $region15: #{generator_forward.1} parent=1 // pred_check_branch
      %23 = sbr.rel (0) target = $region17
    $region16: #{generator_forward.1} parent=1 // pred_region
      _
    $region17: #{generator_forward.1} parent=1 // pred_fallthru
      _
    // Predicated region
    $region18: #{generator_forward.1} parent=1 // pred_check
      _
    $region19: #{generator_forward.1} parent=1 // pred_check_branch
      %25 = sbr.rel (0) target = $region21
    $region20: #{generator_forward.1} parent=1 // pred_region
      _
    $region21: #{generator_forward.1} parent=1 // pred_fallthru
      _
    // Predicated region
    $region22: #{generator_forward.1} parent=1 // pred_check
      _
    $region23: #{generator_forward.1} parent=1 // pred_check_branch
      %27 = sbr.rel (0) target = $region25
    $region24: #{generator_forward.1} parent=1 // pred_region
      _
    $region25: #{generator_forward.1} parent=1 // pred_fallthru
      _
    // Predicated region
    $region26: #{generator_forward.1} parent=1 // pred_check
      _
    $region27: #{generator_forward.1} parent=1 // pred_check_branch
      %29 = sbr.rel (0) target = $region29
    $region28: #{generator_forward.1} parent=1 // pred_region
      _
    $region29: #{generator_forward.1} parent=1 // pred_fallthru
      _
    // Predicated region
    $region30: #{generator_forward.1} parent=1 // pred_check
      _
    $region31: #{generator_forward.1} parent=1 // pred_check_branch
      %31 = sbr.rel (0) target = $region33
    $region32: #{generator_forward.1} parent=1 // pred_region
      _
    $region33: #{generator_forward.1} parent=1 // pred_fallthru
      _
    // Predicated region
    $region34: #{generator_forward.1} parent=1 // pred_check
      _
    $region35: #{generator_forward.1} parent=1 // pred_check_branch
      %33 = sbr.rel (0) target = $region37
    $region36: #{generator_forward.1} parent=1 // pred_region
      _
    $region37: #{generator_forward.1} parent=1 // pred_fallthru
      _
    // Predicated region
    $region38: #{generator_forward.1} parent=1 // pred_check
      _
    $region39: #{generator_forward.1} parent=1 // pred_check_branch
      %35 = sbr.rel (0) target = $region41
    $region40: #{generator_forward.1} parent=1 // pred_region
      _
    $region41: #{generator_forward.1} parent=1 // pred_fallthru
      _
    %v36 = vld [vmem:[%s0] sm:$0xff]
    %v37 = vld [vmem:[%s0 + $0x8] sm:$0xff]
    %v38 = vld [vmem:[%s1] sm:$0xff]
    %v39 = vld [vmem:[%s1 + $0x8] sm:$0xff]
    %v40 = vld [vmem:[%s1 + $0x10] sm:$0xff]
    %v41 = vld [vmem:[%s1 + $0x18] sm:$0xff]
    %v42 = vld [vmem:[%s1 + $0x20] sm:$0xff]
    %v43 = vld [vmem:[%s1 + $0x28] sm:$0xff]
    %v44 = vld [vmem:[%s1 + $0x30] sm:$0xff]
    %v45 = vld [vmem:[%s1 + $0x38] sm:$0xff]
    %v46 = vld [vmem:[%s1 + $0x40] sm:$0xff]
    %v47 = vld [vmem:[%s1 + $0x48] sm:$0xff]
    %v48 = vld [vmem:[%s1 + $0x50] sm:$0xff]
    %v49 = vld [vmem:[%s1 + $0x58] sm:$0xff]
    %v50 = vld [vmem:[%s1 + $0x60] sm:$0xff]
    %v51 = vld [vmem:[%s1 + $0x68] sm:$0xff]
    %v52 = vld [vmem:[%s1 + $0x70] sm:$0xff]
    %v53 = vld [vmem:[%s1 + $0x78] sm:$0xff]
    %54 = vmatprep.subr.mxu0 0.0
    %55 = vmatpush1.msra.mxu0 %v53
    %56 = vmatprep.subr.mxu0 0.0
    %57 = vmatpush1.msra.mxu0 %v52
    %58 = vmatprep.subr.mxu0 0.0
    %59 = vmatpush1.msra.mxu0 %v51
    %60 = vmatprep.subr.mxu0 0.0
    %61 = vmatpush1.msra.mxu0 %v50
    %62 = vmatprep.subr.mxu0 0.0
    %63 = vmatpush1.msra.mxu0 %v49
    %64 = vmatprep.subr.mxu0 0.0
    %65 = vmatpush1.msra.mxu0 %v48
    %66 = vmatprep.subr.mxu0 0.0
    %67 = vmatpush1.msra.mxu0 %v47
    %68 = vmatprep.subr.mxu0 0.0
    %69 = vmatpush1.msra.mxu0 %v46
    %70 = vmatprep.subr.mxu0 0.0
    %71 = vmatpush1.msra.mxu0 %v45
    %72 = vmatprep.subr.mxu0 0.0
    %73 = vmatpush1.msra.mxu0 %v44
    %74 = vmatprep.subr.mxu0 0.0
    %75 = vmatpush1.msra.mxu0 %v43
    %76 = vmatprep.subr.mxu0 0.0
    %77 = vmatpush1.msra.mxu0 %v42
    %78 = vmatprep.subr.mxu0 0.0
    %79 = vmatpush1.msra.mxu0 %v41
    %80 = vmatprep.subr.mxu0 0.0
    %81 = vmatpush1.msra.mxu0 %v40
    %82 = vmatprep.subr.mxu0 0.0
    %83 = vmatpush1.msra.mxu0 %v39
    %84 = vmatprep.subr.mxu0 0.0
    %85 = vmatpush1.msra.mxu0 %v38
    %86 = vmatprep.subr.mxu0 0.0
    %87 = vmatpush2.msra.mxu0 0.0
    %88 = vmatprep.subr.mxu0 0.0
    %89 = vmatpush2.msra.mxu0 0.0
    %90 = vmatprep.subr.mxu0 0.0
    %91 = vmatpush2.msra.mxu0 0.0
    %92 = vmatprep.subr.mxu0 0.0
    %93 = vmatpush2.msra.mxu0 0.0
    %94 = vmatprep.subr.mxu0 0.0
    %95 = vmatpush2.msra.mxu0 0.0
    %96 = vmatprep.subr.mxu0 0.0
    %97 = vmatpush2.msra.mxu0 0.0
    %98 = vmatprep.subr.mxu0 0.0
    %99 = vmatpush2.msra.mxu0 0.0
    %100 = vmatprep.subr.mxu0 0.0
    %101 = vmatpush2.msra.mxu0 0.0
    %102 = vmatprep.subr.mxu0 0.0
    %103 = vmatpush2.msra.mxu0 0.0
    %104 = vmatprep.subr.mxu0 0.0
    %105 = vmatpush2.msra.mxu0 0.0
    %106 = vmatprep.subr.mxu0 0.0
    %107 = vmatpush2.msra.mxu0 0.0
    %108 = vmatprep.subr.mxu0 0.0
    %109 = vmatpush2.msra.mxu0 0.0
    %110 = vmatprep.subr.mxu0 0.0
    %111 = vmatpush2.msra.mxu0 0.0
    %112 = vmatprep.subr.mxu0 0.0
    %113 = vmatpush2.msra.mxu0 0.0
    %114 = vmatprep.subr.mxu0 0.0
    %115 = vmatpush2.msra.mxu0 0.0
    %116 = vmatprep.subr.mxu0 0.0
    %117 = vmatpush2.msra.mxu0 0.0
    %118 = vmatprep.mubr.f32.mxu0 0.0
    %119 = vmatmul.mubr.f32.gmra.mxu0 %v36
    %v120 = vpop.f32.mrf.mxu0
    %v121 = vadd.f32 0.0, %v120
    %v122 = vpop.f32.mrf.mxu0
    %123 = vmatprep.mubr.f32.mxu0 0.0
    %124 = vmatmul.mubr.f32.gmra.mxu0 %v37
    %v125 = vpop.f32.mrf.mxu0
    %v126 = vadd.f32 0.0, %v125
    %v127 = vpop.f32.mrf.mxu0
    %128 = vdwg.mxu0
    %v129 = vld [vmem:[%s2] sm:$0x1]
    %v130 = vld [vmem:[%s3] sm:$0x1]
    %131 = vadd.xlane.f32.xlu0 %v121
    %v132 = vpop.xlane.xlu0 %131
    %133 = vadd.xlane.f32.xlu0 %v126
    %v134 = vpop.xlane.xlu0 %133
    %v135 = vmul.f32 %v132, 0.03125
    %v136 = vmul.f32 %v134, 0.03125
    %v137 = vsub.f32 %v121, %v135
    %v138 = vsub.f32 %v126, %v136
    %v139 = vlaneseq
    %v140 = vand.u32 %v139, 127
    %vm141 = vcmp.lt.s32.totalorder %v140, 32
    %v142 = vsel %vm141, %v137, 0.0
    %v143 = vsel %vm141, %v138, 0.0
    %v144 = vmul.f32 %v142, %v142
    %v145 = vmul.f32 %v143, %v143
    %146 = vadd.xlane.f32.xlu0 %v144
    %v147 = vpop.xlane.xlu0 %146
    %148 = vadd.xlane.f32.xlu0 %v145
    %v149 = vpop.xlane.xlu0 %148
    %v150 = vmul.f32 %v147, 0.03125
    %v151 = vmul.f32 %v149, 0.03125
    %v152 = vadd.f32 %v150, 1e-05
    %v153 = vadd.f32 %v151, 1e-05
    %v154 = vrsqrt.pop %v152
    %v155 = vrsqrt.pop %v153
    %v156 = vmul.f32 %v142, %v154
    %v157 = vmul.f32 %v143, %v155
    %v159 = vlaneseq
    %v160 = vshrl.u32 %v159, 7
    %v161 = vsub.s32 0, %v160
    %v162 = vrot.slane %v129, %v161
    %v164 = vmul.f32 %v156, %v162
    %v165 = vmul.f32 %v157, %v162
    %v167 = vlaneseq
    %v168 = vshrl.u32 %v167, 7
    %v169 = vsub.s32 0, %v168
    %v170 = vrot.slane %v130, %v169
    %v172 = vadd.f32 %v164, %v170
    %v173 = vadd.f32 %v165, %v170
    %v174 = vtanh.pop %v172
    %v175 = vtanh.pop %v173
    %v176 = vadd.f32 %v174, %v36
    %v177 = vadd.f32 %v175, %v37
    %v178 = vld [vmem:[%s4] sm:$0xff]
    %v179 = vld [vmem:[%s4 + $0x8] sm:$0xff]
    %v180 = vld [vmem:[%s4 + $0x10] sm:$0xff]
    %v181 = vld [vmem:[%s4 + $0x18] sm:$0xff]
    %v182 = vld [vmem:[%s4 + $0x20] sm:$0xff]
    %v183 = vld [vmem:[%s4 + $0x28] sm:$0xff]
    %v184 = vld [vmem:[%s4 + $0x30] sm:$0xff]
    %v185 = vld [vmem:[%s4 + $0x38] sm:$0xff]
    %v186 = vld [vmem:[%s4 + $0x40] sm:$0xff]
    %v187 = vld [vmem:[%s4 + $0x48] sm:$0xff]
    %v188 = vld [vmem:[%s4 + $0x50] sm:$0xff]
    %v189 = vld [vmem:[%s4 + $0x58] sm:$0xff]
    %v190 = vld [vmem:[%s4 + $0x60] sm:$0xff]
    %v191 = vld [vmem:[%s4 + $0x68] sm:$0xff]
    %v192 = vld [vmem:[%s4 + $0x70] sm:$0xff]
    %v193 = vld [vmem:[%s4 + $0x78] sm:$0xff]
    %194 = vmatprep.subr.mxu0 0.0
    %195 = vmatpush1.msra.mxu0 %v193
    %196 = vmatprep.subr.mxu0 0.0
    %197 = vmatpush1.msra.mxu0 %v192
    %198 = vmatprep.subr.mxu0 0.0
    %199 = vmatpush1.msra.mxu0 %v191
    %200 = vmatprep.subr.mxu0 0.0
    %201 = vmatpush1.msra.mxu0 %v190
    %202 = vmatprep.subr.mxu0 0.0
    %203 = vmatpush1.msra.mxu0 %v189
    %204 = vmatprep.subr.mxu0 0.0
    %205 = vmatpush1.msra.mxu0 %v188
    %206 = vmatprep.subr.mxu0 0.0
    %207 = vmatpush1.msra.mxu0 %v187
    %208 = vmatprep.subr.mxu0 0.0
    %209 = vmatpush1.msra.mxu0 %v186
    %210 = vmatprep.subr.mxu0 0.0
    %211 = vmatpush1.msra.mxu0 %v185
    %212 = vmatprep.subr.mxu0 0.0
    %213 = vmatpush1.msra.mxu0 %v184
    %214 = vmatprep.subr.mxu0 0.0
    %215 = vmatpush1.msra.mxu0 %v183
    %216 = vmatprep.subr.mxu0 0.0
    %217 = vmatpush1.msra.mxu0 %v182
    %218 = vmatprep.subr.mxu0 0.0
    %219 = vmatpush1.msra.mxu0 %v181
    %220 = vmatprep.subr.mxu0 0.0
    %221 = vmatpush1.msra.mxu0 %v180
    %222 = vmatprep.subr.mxu0 0.0
    %223 = vmatpush1.msra.mxu0 %v179
    %224 = vmatprep.subr.mxu0 0.0
    %225 = vmatpush1.msra.mxu0 %v178
    %226 = vmatprep.subr.mxu0 0.0
    %227 = vmatpush2.msra.mxu0 0.0
    %228 = vmatprep.subr.mxu0 0.0
    %229 = vmatpush2.msra.mxu0 0.0
    %230 = vmatprep.subr.mxu0 0.0
    %231 = vmatpush2.msra.mxu0 0.0
    %232 = vmatprep.subr.mxu0 0.0
    %233 = vmatpush2.msra.mxu0 0.0
    %234 = vmatprep.subr.mxu0 0.0
    %235 = vmatpush2.msra.mxu0 0.0
    %236 = vmatprep.subr.mxu0 0.0
    %237 = vmatpush2.msra.mxu0 0.0
    %238 = vmatprep.subr.mxu0 0.0
    %239 = vmatpush2.msra.mxu0 0.0
    %240 = vmatprep.subr.mxu0 0.0
    %241 = vmatpush2.msra.mxu0 0.0
    %242 = vmatprep.subr.mxu0 0.0
    %243 = vmatpush2.msra.mxu0 0.0
    %244 = vmatprep.subr.mxu0 0.0
    %245 = vmatpush2.msra.mxu0 0.0
    %246 = vmatprep.subr.mxu0 0.0
    %247 = vmatpush2.msra.mxu0 0.0
    %248 = vmatprep.subr.mxu0 0.0
    %249 = vmatpush2.msra.mxu0 0.0
    %250 = vmatprep.subr.mxu0 0.0
    %251 = vmatpush2.msra.mxu0 0.0
    %252 = vmatprep.subr.mxu0 0.0
    %253 = vmatpush2.msra.mxu0 0.0
    %254 = vmatprep.subr.mxu0 0.0
    %255 = vmatpush2.msra.mxu0 0.0
    %256 = vmatprep.subr.mxu0 0.0
    %257 = vmatpush2.msra.mxu0 0.0
    %258 = vmatprep.mubr.f32.mxu0 0.0
    %259 = vmatmul.mubr.f32.gmra.mxu0 %v176
    %v260 = vpop.f32.mrf.mxu0
    %v261 = vadd.f32 0.0, %v260
    %v262 = vpop.f32.mrf.mxu0
    %263 = vmatprep.mubr.f32.mxu0 0.0
    %264 = vmatmul.mubr.f32.gmra.mxu0 %v177
    %v265 = vpop.f32.mrf.mxu0
    %v266 = vadd.f32 0.0, %v265
    %v267 = vpop.f32.mrf.mxu0
    %268 = vdwg.mxu0
    %v269 = vld [vmem:[%s5] sm:$0x1]
    %v270 = vld [vmem:[%s6] sm:$0x1]
    %271 = vadd.xlane.f32.xlu0 %v261
    %v272 = vpop.xlane.xlu0 %271
    %273 = vadd.xlane.f32.xlu0 %v266
    %v274 = vpop.xlane.xlu0 %273
    %v275 = vmul.f32 %v272, 0.03125
    %v276 = vmul.f32 %v274, 0.03125
    %v277 = vsub.f32 %v261, %v275
    %v278 = vsub.f32 %v266, %v276
    %v279 = vsel %vm141, %v277, 0.0
    %v280 = vsel %vm141, %v278, 0.0
    %v281 = vmul.f32 %v279, %v279
    %v282 = vmul.f32 %v280, %v280
    %283 = vadd.xlane.f32.xlu0 %v281
    %v284 = vpop.xlane.xlu0 %283
    %285 = vadd.xlane.f32.xlu0 %v282
    %v286 = vpop.xlane.xlu0 %285
    %v287 = vmul.f32 %v284, 0.03125
    %v288 = vmul.f32 %v286, 0.03125
    %v289 = vadd.f32 %v287, 1e-05
    %v290 = vadd.f32 %v288, 1e-05
    %v291 = vrsqrt.pop %v289
    %v292 = vrsqrt.pop %v290
    %v293 = vmul.f32 %v279, %v291
    %v294 = vmul.f32 %v280, %v292
    %v296 = vlaneseq
    %v297 = vshrl.u32 %v296, 7
    %v298 = vsub.s32 0, %v297
    %v299 = vrot.slane %v269, %v298
    %v301 = vmul.f32 %v293, %v299
    %v302 = vmul.f32 %v294, %v299
    %v304 = vlaneseq
    %v305 = vshrl.u32 %v304, 7
    %v306 = vsub.s32 0, %v305
    %v307 = vrot.slane %v270, %v306
    %v309 = vadd.f32 %v301, %v307
    %v310 = vadd.f32 %v302, %v307
    %v311 = vtanh.pop %v309
    %v312 = vtanh.pop %v310
    %v313 = vadd.f32 %v311, %v176
    %v314 = vadd.f32 %v312, %v177
    %v315 = vld [vmem:[%s7] sm:$0xff]
    %v316 = vld [vmem:[%s7 + $0x8] sm:$0xff]
    %v317 = vld [vmem:[%s7 + $0x10] sm:$0xff]
    %v318 = vld [vmem:[%s7 + $0x18] sm:$0xff]
    %v319 = vld [vmem:[%s7 + $0x20] sm:$0xff]
    %v320 = vld [vmem:[%s7 + $0x28] sm:$0xff]
    %v321 = vld [vmem:[%s7 + $0x30] sm:$0xff]
    %v322 = vld [vmem:[%s7 + $0x38] sm:$0xff]
    %v323 = vld [vmem:[%s7 + $0x40] sm:$0xff]
    %v324 = vld [vmem:[%s7 + $0x48] sm:$0xff]
    %v325 = vld [vmem:[%s7 + $0x50] sm:$0xff]
    %v326 = vld [vmem:[%s7 + $0x58] sm:$0xff]
    %v327 = vld [vmem:[%s7 + $0x60] sm:$0xff]
    %v328 = vld [vmem:[%s7 + $0x68] sm:$0xff]
    %v329 = vld [vmem:[%s7 + $0x70] sm:$0xff]
    %v330 = vld [vmem:[%s7 + $0x78] sm:$0xff]
    %331 = vmatprep.subr.mxu0 0.0
    %332 = vmatpush1.msra.mxu0 %v330
    %333 = vmatprep.subr.mxu0 0.0
    %334 = vmatpush1.msra.mxu0 %v329
    %335 = vmatprep.subr.mxu0 0.0
    %336 = vmatpush1.msra.mxu0 %v328
    %337 = vmatprep.subr.mxu0 0.0
    %338 = vmatpush1.msra.mxu0 %v327
    %339 = vmatprep.subr.mxu0 0.0
    %340 = vmatpush1.msra.mxu0 %v326
    %341 = vmatprep.subr.mxu0 0.0
    %342 = vmatpush1.msra.mxu0 %v325
    %343 = vmatprep.subr.mxu0 0.0
    %344 = vmatpush1.msra.mxu0 %v324
    %345 = vmatprep.subr.mxu0 0.0
    %346 = vmatpush1.msra.mxu0 %v323
    %347 = vmatprep.subr.mxu0 0.0
    %348 = vmatpush1.msra.mxu0 %v322
    %349 = vmatprep.subr.mxu0 0.0
    %350 = vmatpush1.msra.mxu0 %v321
    %351 = vmatprep.subr.mxu0 0.0
    %352 = vmatpush1.msra.mxu0 %v320
    %353 = vmatprep.subr.mxu0 0.0
    %354 = vmatpush1.msra.mxu0 %v319
    %355 = vmatprep.subr.mxu0 0.0
    %356 = vmatpush1.msra.mxu0 %v318
    %357 = vmatprep.subr.mxu0 0.0
    %358 = vmatpush1.msra.mxu0 %v317
    %359 = vmatprep.subr.mxu0 0.0
    %360 = vmatpush1.msra.mxu0 %v316
    %361 = vmatprep.subr.mxu0 0.0
    %362 = vmatpush1.msra.mxu0 %v315
    %363 = vmatprep.subr.mxu0 0.0
    %364 = vmatpush2.msra.mxu0 0.0
    %365 = vmatprep.subr.mxu0 0.0
    %366 = vmatpush2.msra.mxu0 0.0
    %367 = vmatprep.subr.mxu0 0.0
    %368 = vmatpush2.msra.mxu0 0.0
    %369 = vmatprep.subr.mxu0 0.0
    %370 = vmatpush2.msra.mxu0 0.0
    %371 = vmatprep.subr.mxu0 0.0
    %372 = vmatpush2.msra.mxu0 0.0
    %373 = vmatprep.subr.mxu0 0.0
    %374 = vmatpush2.msra.mxu0 0.0
    %375 = vmatprep.subr.mxu0 0.0
    %376 = vmatpush2.msra.mxu0 0.0
    %377 = vmatprep.subr.mxu0 0.0
    %378 = vmatpush2.msra.mxu0 0.0
    %379 = vmatprep.subr.mxu0 0.0
    %380 = vmatpush2.msra.mxu0 0.0
    %381 = vmatprep.subr.mxu0 0.0
    %382 = vmatpush2.msra.mxu0 0.0
    %383 = vmatprep.subr.mxu0 0.0
    %384 = vmatpush2.msra.mxu0 0.0
    %385 = vmatprep.subr.mxu0 0.0
    %386 = vmatpush2.msra.mxu0 0.0
    %387 = vmatprep.subr.mxu0 0.0
    %388 = vmatpush2.msra.mxu0 0.0
    %389 = vmatprep.subr.mxu0 0.0
    %390 = vmatpush2.msra.mxu0 0.0
    %391 = vmatprep.subr.mxu0 0.0
    %392 = vmatpush2.msra.mxu0 0.0
    %393 = vmatprep.subr.mxu0 0.0
    %394 = vmatpush2.msra.mxu0 0.0
    %395 = vmatprep.mubr.f32.mxu0 0.0
    %396 = vmatmul.mubr.f32.gmra.mxu0 %v313
    %v397 = vpop.f32.mrf.mxu0
    %v398 = vadd.f32 0.0, %v397
    %v399 = vpop.f32.mrf.mxu0
    %400 = vmatprep.mubr.f32.mxu0 0.0
    %401 = vmatmul.mubr.f32.gmra.mxu0 %v314
    %v402 = vpop.f32.mrf.mxu0
    %v403 = vadd.f32 0.0, %v402
    %v404 = vpop.f32.mrf.mxu0
    %405 = vdwg.mxu0
    %v406 = vld [vmem:[%s8] sm:$0x1]
    %v407 = vld [vmem:[%s9] sm:$0x1]
    %408 = vadd.xlane.f32.xlu0 %v398
    %v409 = vpop.xlane.xlu0 %408
    %410 = vadd.xlane.f32.xlu0 %v403
    %v411 = vpop.xlane.xlu0 %410
    %v412 = vmul.f32 %v409, 0.0625
    %v413 = vmul.f32 %v411, 0.0625
    %v414 = vsub.f32 %v398, %v412
    %v415 = vsub.f32 %v403, %v413
    %vm416 = vcmp.lt.s32.totalorder %v140, 16
    %v417 = vsel %vm416, %v414, 0.0
    %v418 = vsel %vm416, %v415, 0.0
    %v419 = vmul.f32 %v417, %v417
    %v420 = vmul.f32 %v418, %v418
    %421 = vadd.xlane.f32.xlu0 %v419
    %v422 = vpop.xlane.xlu0 %421
    %423 = vadd.xlane.f32.xlu0 %v420
    %v424 = vpop.xlane.xlu0 %423
    %v425 = vmul.f32 %v422, 0.0625
    %v426 = vmul.f32 %v424, 0.0625
    %v427 = vadd.f32 %v425, 1e-05
    %v428 = vadd.f32 %v426, 1e-05
    %v429 = vrsqrt.pop %v427
    %v430 = vrsqrt.pop %v428
    %v431 = vmul.f32 %v417, %v429
    %v432 = vmul.f32 %v418, %v430
    %v434 = vlaneseq
    %v435 = vshrl.u32 %v434, 7
    %v436 = vsub.s32 0, %v435
    %v437 = vrot.slane %v406, %v436
    %v439 = vmul.f32 %v431, %v437
    %v440 = vmul.f32 %v432, %v437
    %v442 = vlaneseq
    %v443 = vshrl.u32 %v442, 7
    %v444 = vsub.s32 0, %v443
    %v445 = vrot.slane %v407, %v444
    %v447 = vadd.f32 %v439, %v445
    %v448 = vadd.f32 %v440, %v445
    %v449 = vtanh.pop %v447
    %v450 = vtanh.pop %v448
    %451 = vst [vmem:[#allocation2] sm:$0xff] %v449
    %452 = vst [vmem:[#allocation2 + $0x8] sm:$0xff] %v450
    // Predicated region
    $region42: #{generator_forward.1} parent=1 // pred_check
      _
    $region43: #{generator_forward.1} parent=1 // pred_check_branch
      %454 = sbr.rel (0) target = $region45
    $region44: #{generator_forward.1} parent=1 // pred_region
      %s456 = ssub.s32 256, 256
      %457 = vsyncadd [#allocation3], %s456
      %s458 = sshll.u32 [#allocation2], 4
      %s459 = int_to_ptr.vmem [resolvable:$true] %s458
      %464 = dma.vmem_to_hbm [thread:$0]  %s459, 256, %s10, [#allocation3], 128, 128, 8
    $region45: #{generator_forward.1} parent=1 // pred_fallthru
      _
    // Predicated region
    $region46: #{generator_forward.1} parent=1 // pred_check
      _
    $region47: #{generator_forward.1} parent=1 // pred_check_branch
      %466 = sbr.rel (0) target = $region49
    $region48: #{generator_forward.1} parent=1 // pred_region
      %467 = dma.done [#allocation3], 256
    $region49: #{generator_forward.1} parent=1 // pred_fallthru
      _
    %468 = vsyncpa [#allocation3], 1

</llo_original>
